<compile_context>
chip_gen: v7x
topology: tpu7x:2x2x1
jax: 0.10.0
libtpu: 0.0.40
codegen_flags: <defaults>
</compile_context>

<pallas_src>
import functools

import jax
import jax.numpy as jnp
from jax.experimental import pallas as pl
from jax.experimental.pallas import tpu as pltpu

LANE = 128
_DESIRED_TILE_ROWS = 2048  # 2048 x 128 x 4B = 1 MiB per f32 input tile


def _mse_ssd_kernel(x_ref, t_ref, o_ref):
    """Accumulates sum((x - t)^2) into a resident (8, 128) output block.

    Grid = (nc, inner). Axis 0 ("parallel") shards independent row ranges
    across TensorCores; axis 1 ("arbitrary") is the sequential reduction.
    """
    i = pl.program_id(1)

    @pl.when(i == 0)
    def _():
        o_ref[...] = jnp.zeros_like(o_ref)

    d = x_ref[...].astype(jnp.float32) - t_ref[...].astype(jnp.float32)
    sq = d * d
    tr = sq.shape[0]
    # VPU-only per-step reduce: fold sublane blocks into one (8, 128) vreg.
    o_ref[...] += jnp.sum(sq.reshape(tr // 8, 8, LANE), axis=0)


def _ssd_pallas(x2d, t2d, nc, inner, tile_rows):
    """Sum of squared differences over a (bulk_rows, 128) slab via Pallas."""
    bulk_elems = nc * inner * tile_rows * LANE
    in_bytes = x2d.dtype.itemsize + t2d.dtype.itemsize
    cost = pl.CostEstimate(
        flops=3 * bulk_elems,
        transcendentals=0,
        bytes_accessed=bulk_elems * in_bytes + nc * 8 * LANE * 4,
    )
    row_map = lambda c, i: (c * inner + i, 0)

    partials = pl.pallas_call(
        _mse_ssd_kernel,
        out_shape=jax.ShapeDtypeStruct((nc * 8, LANE), jnp.float32),
        grid_spec=pltpu.PrefetchScalarGridSpec(
            num_scalar_prefetch=0,
            grid=(nc, inner),
            in_specs=[
                pl.BlockSpec((tile_rows, LANE), row_map),
                pl.BlockSpec((tile_rows, LANE), row_map),
            ],
            out_specs=pl.BlockSpec((8, LANE), lambda c, i: (c, 0)),
        ),
        compiler_params=pltpu.CompilerParams(
            dimension_semantics=("parallel", "arbitrary"),
        ),
        cost_estimate=cost,
    )(x2d, t2d)
    # Tiny epilogue reduce (nc*8*128 elements) in plain JAX.
    return jnp.sum(partials)


def _plan(n_elems, itemsize):
    """Static tiling plan: (nc, inner, tile_rows, bulk_rows) or None (too small)."""
    sub = 8 * max(1, 4 // itemsize)  # sublane multiple (16 for bf16, 32 for i8)
    rows_total = n_elems // LANE
    if rows_total < sub:
        return None
    grid_total = max(1, -(-rows_total // _DESIRED_TILE_ROWS))  # ceil div
    if grid_total > 1 and grid_total % 2:
        grid_total += 1  # even tile count so the reduction can split over 2 TCs
    tile_rows = (rows_total // grid_total) // sub * sub
    if tile_rows == 0:
        return None
    nc = 2 if grid_total % 2 == 0 else 1
    inner = grid_total // nc
    bulk_rows = grid_total * tile_rows
    return nc, inner, tile_rows, bulk_rows


@jax.jit
def content_loss_forward(x, target):
    """Returns (input_passthrough, mse_loss_scalar). Matches ContentLoss.forward."""
    assert x.shape == target.shape, "input and target must match (as in F.mse_loss)"
    n_elems = x.size
    flat_x = x.reshape(-1)
    flat_t = target.reshape(-1)

    itemsize = min(x.dtype.itemsize, target.dtype.itemsize)
    plan = _plan(n_elems, itemsize)

    if plan is None:
        # Too small for even one (sub, 128) tile: plain JAX.
        d = flat_x.astype(jnp.float32) - flat_t.astype(jnp.float32)
        return x, jnp.sum(d * d) / jnp.float32(n_elems)

    nc, inner, tile_rows, bulk_rows = plan
    bulk_elems = bulk_rows * LANE

    if bulk_elems == n_elems:
        # Typical conv-feature-map case: pure reshape, zero extra HBM traffic.
        xb, tb = flat_x, flat_t
        tail_ssd = jnp.float32(0.0)
    else:
        # Kernel covers the tile-aligned bulk; the small tail is summed in JAX.
        xb = jax.lax.slice(flat_x, (0,), (bulk_elems,))
        tb = jax.lax.slice(flat_t, (0,), (bulk_elems,))
        xt = jax.lax.slice(flat_x, (bulk_elems,), (n_elems,)).astype(jnp.float32)
        tt = jax.lax.slice(flat_t, (bulk_elems,), (n_elems,)).astype(jnp.float32)
        tail_ssd = jnp.sum((xt - tt) ** 2)

    x2d = xb.reshape(bulk_rows, LANE)
    t2d = tb.reshape(bulk_rows, LANE)

    ssd = _ssd_pallas(x2d, t2d, nc, inner, tile_rows)
    loss = (ssd + tail_ssd) / jnp.float32(n_elems)
    # ContentLoss.forward returns its input unchanged (loss stored as side value).
    return x, loss


class ContentLoss:
    """Mirrors the PyTorch module: holds a detached target; __call__ returns the
    input unchanged and records the MSE loss in self.loss."""

    def __init__(self, target):
        self.target = jax.lax.stop_gradient(target)
        self.loss = jnp.zeros((), jnp.float32)  # F.mse_loss(target, target) == 0

    def __call__(self, x):
        out, self.loss = content_loss_forward(x, self.target)
        return out


if __name__ == "__main__":
    key = jax.random.PRNGKey(0)
    k_in, k_tgt, k_in2, k_tgt2 = jax.random.split(key, 4)

    # Small NCHW shapes consistent with a conv-feature-map ContentLoss target.
    N, C, H, W = 2, 4, 16, 16
    x = jax.random.normal(k_in, (N, C, H, W), dtype=jnp.float32)
    target = jax.random.normal(k_tgt, (N, C, H, W), dtype=jnp.float32)

    out, loss = content_loss_forward(x, target)
    jax.block_until_ready((out, loss))

    ref_loss = jnp.mean((x - target) ** 2)
    assert jnp.allclose(loss, ref_loss, rtol=1e-5, atol=1e-6), (loss, ref_loss)
    assert jnp.array_equal(out, x)

    # Module-style usage + a non-tile-aligned shape to exercise the tail path.
    x2 = jax.random.normal(k_in2, (3, 5, 7, 11), dtype=jnp.float32)
    t2 = jax.random.normal(k_tgt2, (3, 5, 7, 11), dtype=jnp.float32)
    cl = ContentLoss(t2)
    out2 = cl(x2)
    jax.block_until_ready((out2, cl.loss))
    ref2 = jnp.mean((x2 - t2) ** 2)
    assert jnp.allclose(cl.loss, ref2, rtol=1e-5, atol=1e-6), (cl.loss, ref2)
    assert jnp.array_equal(out2, x2)

    print("KERNEL_OK")
</pallas_src>

<mosaic_0001>
module attributes {stable_mosaic.version = 11 : i64} {
  func.func @_mse_ssd_kernel(%arg0: i32, %arg1: i32, %arg2: memref<16x128xf32, #tpu.memory_space<vmem>>, %arg3: memref<16x128xf32, #tpu.memory_space<vmem>>, %arg4: memref<8x128xf32, #tpu.memory_space<vmem>>) attributes {dimension_semantics = [#tpu.dimension_semantics<parallel>, #tpu.dimension_semantics<arbitrary>], iteration_bounds = array<i64: 1, 1>, scalar_prefetch = 0 : i64, scratch_operands = 0 : i64, tpu.core_type = #tpu.core_type<tc>, window_params = [{transform_indices = @transform_0, window_bounds = array<i64: 16, 128>}, {transform_indices = @transform_1, window_bounds = array<i64: 16, 128>}, {transform_indices = @transform_2, window_bounds = array<i64: 8, 128>}]} {
    %c0_i32 = arith.constant 0 : i32
    %0 = arith.cmpi eq, %arg1, %c0_i32 : i32
    %1 = arith.extui %0 : i1 to i32
    %c0_i32_0 = arith.constant 0 : i32
    %2 = arith.cmpi ne, %1, %c0_i32_0 : i32
    scf.if %2 {
      %cst_8 = arith.constant 0.000000e+00 : f32
      %12 = vector.broadcast %cst_8 : f32 to vector<8x128xf32>
      %c0_9 = arith.constant 0 : index
      %c0_10 = arith.constant 0 : index
      %13 = vector.load %arg4[%c0_9, %c0_10] : memref<8x128xf32, #tpu.memory_space<vmem>>, vector<8x128xf32>
      tpu.vector_store %arg4[%c0_9, %c0_10], %12 {strides = array<i32>} : memref<8x128xf32, #tpu.memory_space<vmem>>, vector<8x128xf32>,
    } else {
    }
    %c0 = arith.constant 0 : index
    %c0_1 = arith.constant 0 : index
    %3 = vector.load %arg2[%c0, %c0_1] : memref<16x128xf32, #tpu.memory_space<vmem>>, vector<16x128xf32>
    %c0_2 = arith.constant 0 : index
    %c0_3 = arith.constant 0 : index
    %4 = vector.load %arg3[%c0_2, %c0_3] : memref<16x128xf32, #tpu.memory_space<vmem>>, vector<16x128xf32>
    %5 = arith.subf %3, %4 : vector<16x128xf32>
    %6 = arith.mulf %5, %5 : vector<16x128xf32>
    %c0_4 = arith.constant 0 : index
    %c0_5 = arith.constant 0 : index
    %7 = vector.load %arg4[%c0_4, %c0_5] : memref<8x128xf32, #tpu.memory_space<vmem>>, vector<8x128xf32>
    %8 = vector.shape_cast %6 : vector<16x128xf32> to vector<2x8x128xf32>
    %cst = arith.constant dense<0.000000e+00> : vector<8x128xf32>
    %9 = vector.multi_reduction <add>, %8, %cst [0] : vector<2x8x128xf32> to vector<8x128xf32>
    %10 = arith.addf %7, %9 : vector<8x128xf32>
    %c0_6 = arith.constant 0 : index
    %c0_7 = arith.constant 0 : index
    %11 = vector.load %arg4[%c0_6, %c0_7] : memref<8x128xf32, #tpu.memory_space<vmem>>, vector<8x128xf32>
    tpu.vector_store %arg4[%c0_6, %c0_7], %10 {strides = array<i32>} : memref<8x128xf32, #tpu.memory_space<vmem>>, vector<8x128xf32>,
    return
  }
  func.func @transform_0(%arg0: i32, %arg1: i32) -> (i32, i32) {
    %c1_i32 = arith.constant 1 : i32
    %0 = arith.muli %arg0, %c1_i32 : i32
    %1 = arith.addi %0, %arg1 : i32
    %c0_i32 = arith.constant 0 : i32
    %c0_i32_0 = arith.constant 0 : i32
    return %1, %c0_i32 : i32, i32
  }
  func.func @transform_1(%arg0: i32, %arg1: i32) -> (i32, i32) {
    %c1_i32 = arith.constant 1 : i32
    %0 = arith.muli %arg0, %c1_i32 : i32
    %1 = arith.addi %0, %arg1 : i32
    %c0_i32 = arith.constant 0 : i32
    %c0_i32_0 = arith.constant 0 : i32
    return %1, %c0_i32 : i32, i32
  }
  func.func @transform_2(%arg0: i32, %arg1: i32) -> (i32, i32) {
    %c0_i32 = arith.constant 0 : i32
    %c0_i32_0 = arith.constant 0 : i32
    return %arg0, %c0_i32 : i32, i32
  }
}

</mosaic_0001>

<llo_original>
// kernel: content_loss_forward.1
$region0: #{content_loss_forward.1}
  #allocation0 [shape = 'u32[]', space=smem, size = 0x4, offset = 0x4, fixed_abs, tag = 'smem constant byte address 0x4 - core index']
  #allocation1 [shape = 'u32[144,128]{1,0:T(1,128)}', space=vmem, size = 0x12000, scoped, tag = 'internal scratch']
  %s0 = inlined_call_operand.vmem [shape: f32[16,128], index: 0, kind: input, shape index: {}]
  %s1 = inlined_call_operand.vmem [shape: f32[16,128], index: 1, kind: input, shape index: {}]
  %s2 = inlined_call_operand.vmem [shape: f32[8,128], index: 2, kind: output, shape index: {}]
  %s3 = sld [smem:[#allocation0]]
  $region22: #{content_loss_forward.1} parent=0
    _
  %s5 = ssub.s32 1, %s3
  %s6 = scalar_select 0, %s5, %s3
  // Predicated region
  $region2: #{content_loss_forward.1} parent=0 // pred_check
    _
  $region3: #{content_loss_forward.1} parent=0 // pred_check_branch
    %8 = sbr.rel (0) target = $region5
  $region4: #{content_loss_forward.1} parent=0 // pred_region
    %s9 = sadd.s32 0, 0
    %s10 = smul.u32 2, %s9
    %p11 = scmp.lt.s32.totalorder %s10, 1
    %s12 = scalar_select %p11, %s10, 1
    %s13 = smul.addr %s12, 8
    %s14 = scalar_lea.vmem %s0, %s13
    %s15 = sadd.s32 0, 0
    %s16 = smul.u32 2, %s15
  $region5: #{content_loss_forward.1} parent=0 // pred_fallthru
    _
  // Predicated region
  $region6: #{content_loss_forward.1} parent=0 // pred_check
    _
  $region7: #{content_loss_forward.1} parent=0 // pred_check_branch
    %18 = sbr.rel (0) target = $region9
  $region8: #{content_loss_forward.1} parent=0 // pred_region
    %s19 = sadd.s32 0, 0
    %s20 = smul.u32 2, %s19
    %p21 = scmp.lt.s32.totalorder %s20, 1
    %s22 = scalar_select %p21, %s20, 1
    %s23 = smul.addr %s22, 8
    %s24 = scalar_lea.vmem %s1, %s23
    %s25 = sadd.s32 0, 0
    %s26 = smul.u32 2, %s25
  $region9: #{content_loss_forward.1} parent=0 // pred_fallthru
    _
  %s27 = sadd.s32 0, 0
  %s28 = smul.u32 2, %s27
  %p29 = scmp.lt.s32.totalorder %s28, 1
  %s30 = scalar_select %p29, %s28, 1
  %s31 = smul.addr %s30, 8
  %s32 = scalar_lea.vmem %s0, %s31
  %s33 = sadd.s32 0, 0
  %s34 = smul.u32 2, %s33
  %p35 = scmp.lt.s32.totalorder %s34, 1
  %s36 = scalar_select %p35, %s34, 1
  %s37 = smul.addr %s36, 8
  %s38 = scalar_lea.vmem %s1, %s37
  %s39 = sadd.s32 0, 0
  %s40 = smul.u32 2, %s39
  %p41 = scmp.lt.s32.totalorder %s40, 1
  %s42 = scalar_select %p41, %s40, 1
  %s43 = smul.addr %s42, 8
  %s44 = scalar_lea.vmem %s0, %s43
  %s45 = sadd.s32 0, 0
  %s46 = smul.u32 2, %s45
  %s47 = sadd.s32 0, 0
  %s48 = smul.u32 2, %s47
  %p49 = scmp.lt.s32.totalorder %s48, 1
  %s50 = scalar_select %p49, %s48, 1
  %s51 = smul.addr %s50, 8
  %s52 = scalar_lea.vmem %s1, %s51
  %s53 = sadd.s32 0, 0
  %s54 = smul.u32 2, %s53
  %p55 = scmp.eq.s32.totalorder 0, 0
  // Predicated region
  $region10: #{content_loss_forward.1} parent=0 // pred_check
    %p56 = pneg %p55
  $region11: #{content_loss_forward.1} parent=0 // pred_check_branch
    %58 = sbr.rel (%p56) target = $region13
  $region12: #{content_loss_forward.1} parent=0 // pred_region
    %59 = vst [vmem:[%s2] sm:$0xff] 0.0
  $region13: #{content_loss_forward.1} parent=0 // pred_fallthru
    _
  %v60 = vld [vmem:[%s44] sm:$0xff]
  %v61 = vld [vmem:[%s44 + $0x8] sm:$0xff]
  %v62 = vld [vmem:[%s52] sm:$0xff]
  %v63 = vld [vmem:[%s52 + $0x8] sm:$0xff]
  %v64 = vsub.f32 %v60, %v62
  %v65 = vsub.f32 %v61, %v63
  %v66 = vmul.f32 %v64, %v64
  %v67 = vmul.f32 %v65, %v65
  %v68 = vld [vmem:[%s2] sm:$0xff]
  %v69 = vadd.f32 %v66, %v67
  %v70 = vadd.f32 %v68, %v69
  %71 = vst [vmem:[%s2] sm:$0xff] %v70
  // Predicated region
  $region14: #{content_loss_forward.1} parent=0 // pred_check
    _
  $region15: #{content_loss_forward.1} parent=0 // pred_check_branch
    %73 = sbr.rel (0) target = $region17
  $region16: #{content_loss_forward.1} parent=0 // pred_region
    _
  $region17: #{content_loss_forward.1} parent=0 // pred_fallthru
    _
  // Predicated region
  $region18: #{content_loss_forward.1} parent=0 // pred_check
    _
  $region19: #{content_loss_forward.1} parent=0 // pred_check_branch
    %75 = sbr.rel (0) target = $region21
  $region20: #{content_loss_forward.1} parent=0 // pred_region
    _
  $region21: #{content_loss_forward.1} parent=0 // pred_fallthru
    _

</llo_original>
